<compile_context>
chip_gen: v5e
topology: v5e:2x2
jax: 0.10.0
libtpu: 0.0.40
codegen_flags: <defaults>
</compile_context>

<pallas_src>
import math
import functools

import jax
import jax.numpy as jnp
from jax.experimental import pallas as pl
from jax.experimental.pallas import tpu as pltpu


# ----------------------------- small helpers --------------------------------
def _round_up(x, m):
    return (x + m - 1) // m * m


def _cdiv(a, b):
    return -(-a // b)


def _plan_axis(size, cap, align):
    """Split `size` into nb equal-ish tiles (each a multiple of `align`, <= ~cap),
    keeping padding waste under one alignment group per block."""
    nb = max(1, _cdiv(size, cap))
    tile = _round_up(_cdiv(size, nb), align)
    return tile, nb * tile


def _vmem_capacity_bytes():
    try:
        return int(pltpu.get_tpu_info().vmem_capacity_bytes)
    except Exception:  # pragma: no cover - defensive fallback
        return 128 << 20


# Generation-aware caps (v7x has 64 MiB VMEM per TensorCore; v5e/v6e have 128 MiB).
_VMEM_CAP = _vmem_capacity_bytes()
_IS_SMALL_VMEM = _VMEM_CAP <= (64 << 20)
_TM_CAP = 512
_TN_CAP = 512
_TK_CAP = 1024 if _IS_SMALL_VMEM else 2048
_VMEM_SOFT_CAP = (48 << 20) if _IS_SMALL_VMEM else (100 << 20)


# --------------------------------- kernel -----------------------------------
def _linear_kernel(x_ref, w_ref, b_ref, o_ref, acc_ref):
    """Tiled matmul + bias kernel.

    x_ref:   [tm, tk]  VMEM  activation tile
    w_ref:   [tk, tn]  VMEM  pre-transposed weight tile (K, N layout)
    b_ref:   [1,  tn]  VMEM  bias tile
    o_ref:   [tm, tn]  VMEM  output tile
    acc_ref: [tm, tn]  f32 VMEM scratch accumulator (lives across the K axis)
    """
    k = pl.program_id(2)

    @pl.when(k == 0)
    def _init():
        acc_ref[...] = jnp.zeros_like(acc_ref)

    acc_ref[...] += jnp.dot(
        x_ref[...], w_ref[...], preferred_element_type=jnp.float32
    )

    @pl.when(k == pl.num_programs(2) - 1)
    def _finalize():
        # Bias added exactly once per (i, j) tile, in the epilogue.
        o_ref[...] = (acc_ref[...] + b_ref[...]).astype(o_ref.dtype)


# ------------------------------ host wrappers --------------------------------
def prepare_linear_params(weight, bias=None):
    """One-time preparation (outside jit).

    Transposes the PyTorch-convention (out_features, in_features) weight to a
    lane-dense (K, N) layout and zero-pads weight/bias to tile multiples, so the
    jitted forward never touches the weight again.
    """
    N, K = weight.shape
    tn, Np = _plan_axis(N, _TN_CAP, 128)   # lane-dense output stores
    tk, Kp = _plan_axis(K, _TK_CAP, 128)

    w_kn = jnp.asarray(weight, jnp.float32).T          # (K, N)
    if (Kp, Np) != (K, N):
        w_kn = jnp.pad(w_kn, ((0, Kp - K), (0, Np - N)))

    if bias is None:
        b_row = jnp.zeros((1, Np), jnp.float32)
    else:
        b = jnp.asarray(bias, jnp.float32)
        if Np != N:
            b = jnp.pad(b, (0, Np - N))
        b_row = b.reshape(1, Np)

    return {"w_kn": w_kn, "b_row": b_row, "n_out": int(N), "tn": int(tn), "tk": int(tk)}


@functools.partial(jax.jit, static_argnames=("n_out", "tn", "tk"))
def _linear_forward_prepared(x, w_kn, b_row, *, n_out, tn, tk):
    B, K = x.shape
    Kp, Np = w_kn.shape
    assert K <= Kp and Np % tn == 0 and Kp % tk == 0, (K, Kp, Np, tn, tk)

    # ---- M tiling (padding-waste aware, megacore aware) ---------------------
    grid_n = Np // tn
    nb_m = max(1, _cdiv(B, _TM_CAP))
    if grid_n * nb_m < 2 and B >= 16:
        nb_m = max(nb_m, 2)            # give both v7x TensorCores a parallel block
    tm = _round_up(_cdiv(B, nb_m), 8)
    Mp = nb_m * tm

    x_p = x if (Mp == B and Kp == K) else jnp.pad(x, ((0, Mp - B), (0, Kp - K)))

    grid = (Mp // tm, Np // tn, Kp // tk)

    # f32 footprint: double-buffered x/w/bias/out tiles + the acc scratch.
    footprint = 4 * (2 * tm * tk + 2 * tk * tn + 2 * tm * tn + tm * tn + 2 * tn)
    vmem_limit = int(min(max(footprint + (4 << 20), 16 << 20), _VMEM_SOFT_CAP))

    flops = 2 * Mp * Np * Kp
    bytes_accessed = 4 * (Mp * Kp * grid[1] + Kp * Np * grid[0] + Mp * Np)

    out_p = pl.pallas_call(
        _linear_kernel,
        out_shape=jax.ShapeDtypeStruct((Mp, Np), x.dtype),
        grid_spec=pltpu.PrefetchScalarGridSpec(
            num_scalar_prefetch=0,
            grid=grid,
            in_specs=[
                pl.BlockSpec((tm, tk), lambda i, j, k: (i, k)),   # x tile
                pl.BlockSpec((tk, tn), lambda i, j, k: (k, j)),   # weight.T tile
                pl.BlockSpec((1, tn), lambda i, j, k: (0, j)),    # bias tile
            ],
            out_specs=pl.BlockSpec((tm, tn), lambda i, j, k: (i, j)),
            scratch_shapes=[pltpu.VMEM((tm, tn), jnp.float32)],
        ),
        compiler_params=pltpu.CompilerParams(
            dimension_semantics=("parallel", "parallel", "arbitrary"),
            vmem_limit_bytes=vmem_limit,
        ),
        cost_estimate=pl.CostEstimate(
            flops=flops, transcendentals=0, bytes_accessed=bytes_accessed
        ),
    )(x_p, w_kn, b_row)

    if Mp == B and Np == n_out:
        return out_p
    return out_p[:B, :n_out]


def linear_forward(x, params):
    """Pallas-backed Linear.forward: x @ weight.T + bias (params from prepare)."""
    return _linear_forward_prepared(
        x, params["w_kn"], params["b_row"],
        n_out=params["n_out"], tn=params["tn"], tk=params["tk"],
    )


def init_linear_params(key, in_features, out_features, activation="ReLU"):
    """Deterministic Xavier-normal init matching Linear.reset_parameters('xavier')."""
    if activation == "Tanh":
        gain = 5.0 / 3
    elif activation == "ReLU":
        gain = math.sqrt(2.0)
    elif activation == "LeakyRelu":
        gain = math.sqrt(2.0 / (1 + 0.01 ** 2))
    else:
        gain = math.sqrt(2.0 / (1 + 0.25 ** 2))
    std = gain * math.sqrt(2.0 / (in_features + out_features))
    kw, kb = jax.random.split(key)
    weight = std * jax.random.normal(kw, (out_features, in_features), jnp.float32)
    bias = std * jax.random.normal(kb, (out_features,), jnp.float32)
    return weight, bias


# --------------------------------- demo --------------------------------------
if __name__ == "__main__":
    key = jax.random.PRNGKey(0)
    k_x, k_p, k_x2, k_p2 = jax.random.split(key, 4)

    # Small shapes consistent with the module's 2-D forward.
    B, in_features, out_features = 8, 32, 16
    x = jax.random.normal(k_x, (B, in_features), jnp.float32)
    weight, bias = init_linear_params(k_p, in_features, out_features, activation="ReLU")

    params = prepare_linear_params(weight, bias)        # one-time, outside jit
    out = jax.block_until_ready(linear_forward(x, params))

    ref = x @ weight.T + bias
    assert out.shape == (B, out_features), out.shape
    assert jnp.allclose(out, ref, atol=1e-5, rtol=1e-5)

    # Second case exercises the M-split (two parallel blocks) and N/K padding + slice.
    B2, in2, out2 = 24, 96, 40
    x2 = jax.random.normal(k_x2, (B2, in2), jnp.float32)
    w2, b2 = init_linear_params(k_p2, in2, out2, activation="Tanh")
    p2 = prepare_linear_params(w2, b2)
    y2 = jax.block_until_ready(linear_forward(x2, p2))
    ref2 = x2 @ w2.T + b2
    assert y2.shape == (B2, out2), y2.shape
    assert jnp.allclose(y2, ref2, atol=1e-4, rtol=1e-4)

    print("KERNEL_OK")
</pallas_src>

<mosaic_0001>
module attributes {stable_mosaic.version = 11 : i64} {
  func.func @_linear_kernel(%arg0: i32, %arg1: i32, %arg2: i32, %arg3: memref<8x128xf32, #tpu.memory_space<vmem>>, %arg4: memref<128x128xf32, #tpu.memory_space<vmem>>, %arg5: memref<1x128xf32, #tpu.memory_space<vmem>>, %arg6: memref<8x128xf32, #tpu.memory_space<vmem>>, %arg7: memref<8x128xf32, #tpu.memory_space<vmem>>) attributes {dimension_semantics = [#tpu.dimension_semantics<parallel>, #tpu.dimension_semantics<parallel>, #tpu.dimension_semantics<arbitrary>], iteration_bounds = array<i64: 1, 1, 1>, scalar_prefetch = 0 : i64, scratch_operands = 1 : i64, tpu.core_type = #tpu.core_type<tc>, window_params = [{transform_indices = @transform_0, window_bounds = array<i64: 8, 128>}, {transform_indices = @transform_1, window_bounds = array<i64: 128, 128>}, {transform_indices = @transform_2, window_bounds = array<i64: 1, 128>}, {transform_indices = @transform_3, window_bounds = array<i64: 8, 128>}]} {
    %c0_i32 = arith.constant 0 : i32
    %0 = arith.cmpi eq, %arg2, %c0_i32 : i32
    %1 = arith.extui %0 : i1 to i32
    %c0_i32_0 = arith.constant 0 : i32
    %2 = arith.cmpi ne, %1, %c0_i32_0 : i32
    scf.if %2 {
      %cst_10 = arith.constant 0.000000e+00 : f32
      %12 = vector.broadcast %cst_10 : f32 to vector<8x128xf32>
      %c0_11 = arith.constant 0 : index
      %c0_12 = arith.constant 0 : index
      %13 = vector.load %arg7[%c0_11, %c0_12] : memref<8x128xf32, #tpu.memory_space<vmem>>, vector<8x128xf32>
      tpu.vector_store %arg7[%c0_11, %c0_12], %12 {strides = array<i32>} : memref<8x128xf32, #tpu.memory_space<vmem>>, vector<8x128xf32>,
    } else {
    }
    %c0 = arith.constant 0 : index
    %c0_1 = arith.constant 0 : index
    %3 = vector.load %arg7[%c0, %c0_1] : memref<8x128xf32, #tpu.memory_space<vmem>>, vector<8x128xf32>
    %c0_2 = arith.constant 0 : index
    %c0_3 = arith.constant 0 : index
    %4 = vector.load %arg3[%c0_2, %c0_3] : memref<8x128xf32, #tpu.memory_space<vmem>>, vector<8x128xf32>
    %c0_4 = arith.constant 0 : index
    %c0_5 = arith.constant 0 : index
    %5 = vector.load %arg4[%c0_4, %c0_5] : memref<128x128xf32, #tpu.memory_space<vmem>>, vector<128x128xf32>
    %cst = arith.constant dense<0.000000e+00> : vector<8x128xf32>
    %6 = tpu.matmul %4, %5, %cst {dimension_numbers = #tpu.dot_dimension_numbers<[1], [0], [0], [1], [0, 0, 1, 1], [], []>} : vector<8x128xf32>, vector<128x128xf32>, vector<8x128xf32> -> vector<8x128xf32>
    %7 = arith.addf %3, %6 : vector<8x128xf32>
    %c0_6 = arith.constant 0 : index
    %c0_7 = arith.constant 0 : index
    %8 = vector.load %arg7[%c0_6, %c0_7] : memref<8x128xf32, #tpu.memory_space<vmem>>, vector<8x128xf32>
    tpu.vector_store %arg7[%c0_6, %c0_7], %7 {strides = array<i32>} : memref<8x128xf32, #tpu.memory_space<vmem>>, vector<8x128xf32>,
    %c0_i32_8 = arith.constant 0 : i32
    %9 = arith.cmpi eq, %arg2, %c0_i32_8 : i32
    %10 = arith.extui %9 : i1 to i32
    %c0_i32_9 = arith.constant 0 : i32
    %11 = arith.cmpi ne, %10, %c0_i32_9 : i32
    scf.if %11 {
      %c0_10 = arith.constant 0 : index
      %c0_11 = arith.constant 0 : index
      %12 = vector.load %arg7[%c0_10, %c0_11] : memref<8x128xf32, #tpu.memory_space<vmem>>, vector<8x128xf32>
      %c0_12 = arith.constant 0 : index
      %c0_13 = arith.constant 0 : index
      %13 = vector.load %arg5[%c0_12, %c0_13] : memref<1x128xf32, #tpu.memory_space<vmem>>, vector<1x128xf32>
      %14 = vector.broadcast %13 : vector<1x128xf32> to vector<8x128xf32>
      %15 = arith.addf %12, %14 : vector<8x128xf32>
      %c0_14 = arith.constant 0 : index
      %c0_15 = arith.constant 0 : index
      %16 = vector.load %arg6[%c0_14, %c0_15] : memref<8x128xf32, #tpu.memory_space<vmem>>, vector<8x128xf32>
      tpu.vector_store %arg6[%c0_14, %c0_15], %15 {strides = array<i32>} : memref<8x128xf32, #tpu.memory_space<vmem>>, vector<8x128xf32>,
    } else {
    }
    return
  }
  func.func @transform_0(%arg0: i32, %arg1: i32, %arg2: i32) -> (i32, i32) {
    %c0_i32 = arith.constant 0 : i32
    return %arg0, %arg2 : i32, i32
  }
  func.func @transform_1(%arg0: i32, %arg1: i32, %arg2: i32) -> (i32, i32) {
    %c0_i32 = arith.constant 0 : i32
    return %arg2, %arg1 : i32, i32
  }
  func.func @transform_2(%arg0: i32, %arg1: i32, %arg2: i32) -> (i32, i32) {
    %c0_i32 = arith.constant 0 : i32
    %c0_i32_0 = arith.constant 0 : i32
    return %c0_i32, %arg1 : i32, i32
  }
  func.func @transform_3(%arg0: i32, %arg1: i32, %arg2: i32) -> (i32, i32) {
    %c0_i32 = arith.constant 0 : i32
    return %arg0, %arg1 : i32, i32
  }
}

</mosaic_0001>

<llo_original>
// kernel: _linear_forward_prepared.1
$region0: #{_linear_forward_prepared.1}
  #allocation0 [shape = 'u32[]', space=smem, size = 0x4, offset = 0x4, fixed_abs, tag = 'smem constant byte address 0x4 - core index']
  #allocation1 [shape = 'u32[72,128]{1,0:T(1,128)}', space=vmem, size = 0x9000, scoped, tag = 'internal scratch']
  #allocation2 [shape = 'f32[8,128]{1,0:T(8,128)}', space=vmem, size = 0x1000, scoped, tag = 'scratch operand']
  %s0 = inlined_call_operand.vmem [shape: f32[8,128], index: 0, kind: input, shape index: {}]
  %s1 = inlined_call_operand.hbm [shape: f32[128,128], index: 1, kind: input, shape index: {}]
  %s2 = inlined_call_operand.vmem [shape: f32[1,128], index: 2, kind: input, shape index: {}]
  %s3 = inlined_call_operand.hbm [shape: f32[8,128], index: 3, kind: output, shape index: {}]
  %s4 = sld [smem:[#allocation0]]
  $region34: #{_linear_forward_prepared.1} parent=0
    _
  %s6 = ssub.s32 1, %s4
  %s7 = scalar_select 0, %s6, %s4
  $region1: #{_linear_forward_prepared.1} parent=0
    #allocation3 [shape = 'u8[65536]{0}', space=vmem, size = 0x10000, scoped, tag = 'input window, operand 1, single buffered']
    #allocation4 [shape = 's32[1]{0}', space=sflag, size = 0x4, scoped, tag = 'scoped memory for _linear_forward_prepared.1']
    #allocation5 [shape = 's32[1]{0}', space=sflag, size = 0x4, scoped, tag = 'scoped memory for _linear_forward_prepared.1']
    #allocation6 [shape = 'u8[4096]{0}', space=vmem, size = 0x1000, scoped, tag = 'output window, operand 0, single buffered']
    %8 = vsyncpa [#allocation4], 0
    %9 = vsyncpa [#allocation5], 0
    // Predicated region
    $region2: #{_linear_forward_prepared.1} parent=1 // pred_check
      _
    $region3: #{_linear_forward_prepared.1} parent=1 // pred_check_branch
      %11 = sbr.rel (0) target = $region5
    $region4: #{_linear_forward_prepared.1} parent=1 // pred_region
      _
    $region5: #{_linear_forward_prepared.1} parent=1 // pred_fallthru
      _
    // Predicated region
    $region6: #{_linear_forward_prepared.1} parent=1 // pred_check
      _
    $region7: #{_linear_forward_prepared.1} parent=1 // pred_check_branch
      %13 = sbr.rel (0) target = $region9
    $region8: #{_linear_forward_prepared.1} parent=1 // pred_region
      %15 = vsyncadd [#allocation4], 0
      %s16 = sshll.u32 %s1, 4
      %s17 = int_to_ptr.hbm [resolvable:$true] %s16
      %s18 = sshll.u32 [#allocation3], 4
      %s19 = int_to_ptr.vmem [resolvable:$true] %s18
      %24 = dma.hbm_to_vmem [thread:$0]  %s17, 2048, %s19, [#allocation4], 128, 128, 8
    $region9: #{_linear_forward_prepared.1} parent=1 // pred_fallthru
      _
    // Predicated region
    $region10: #{_linear_forward_prepared.1} parent=1 // pred_check
      _
    $region11: #{_linear_forward_prepared.1} parent=1 // pred_check_branch
      %26 = sbr.rel (0) target = $region13
    $region12: #{_linear_forward_prepared.1} parent=1 // pred_region
      _
    $region13: #{_linear_forward_prepared.1} parent=1 // pred_fallthru
      _
    // Predicated region
    $region14: #{_linear_forward_prepared.1} parent=1 // pred_check
      _
    $region15: #{_linear_forward_prepared.1} parent=1 // pred_check_branch
      %28 = sbr.rel (0) target = $region17
    $region16: #{_linear_forward_prepared.1} parent=1 // pred_region
      %30 = dma.done [#allocation4], 2048
    $region17: #{_linear_forward_prepared.1} parent=1 // pred_fallthru
      _
    %p31 = scmp.eq.s32.totalorder 0, 0
    // Predicated region
    $region18: #{_linear_forward_prepared.1} parent=1 // pred_check
      %p32 = pneg %p31
    $region19: #{_linear_forward_prepared.1} parent=1 // pred_check_branch
      %34 = sbr.rel (%p32) target = $region21
    $region20: #{_linear_forward_prepared.1} parent=1 // pred_region
      %35 = vst [vmem:[#allocation2] sm:$0xff] 0.0
    $region21: #{_linear_forward_prepared.1} parent=1 // pred_fallthru
      _
    %v36 = vld [vmem:[#allocation2] sm:$0xff]
    %v37 = vld [vmem:[%s0] sm:$0xff]
    %v38 = vld [vmem:[#allocation3] sm:$0xff]
    %v39 = vld [vmem:[#allocation3 + $0x8] sm:$0xff]
    %v40 = vld [vmem:[#allocation3 + $0x10] sm:$0xff]
    %v41 = vld [vmem:[#allocation3 + $0x18] sm:$0xff]
    %v42 = vld [vmem:[#allocation3 + $0x20] sm:$0xff]
    %v43 = vld [vmem:[#allocation3 + $0x28] sm:$0xff]
    %v44 = vld [vmem:[#allocation3 + $0x30] sm:$0xff]
    %v45 = vld [vmem:[#allocation3 + $0x38] sm:$0xff]
    %v46 = vld [vmem:[#allocation3 + $0x40] sm:$0xff]
    %v47 = vld [vmem:[#allocation3 + $0x48] sm:$0xff]
    %v48 = vld [vmem:[#allocation3 + $0x50] sm:$0xff]
    %v49 = vld [vmem:[#allocation3 + $0x58] sm:$0xff]
    %v50 = vld [vmem:[#allocation3 + $0x60] sm:$0xff]
    %v51 = vld [vmem:[#allocation3 + $0x68] sm:$0xff]
    %v52 = vld [vmem:[#allocation3 + $0x70] sm:$0xff]
    %v53 = vld [vmem:[#allocation3 + $0x78] sm:$0xff]
    %54 = vmatpush.msra.mxu0 %v53
    %55 = vmatpush.msra.mxu0 %v52
    %56 = vmatpush.msra.mxu0 %v51
    %57 = vmatpush.msra.mxu0 %v50
    %58 = vmatpush.msra.mxu0 %v49
    %59 = vmatpush.msra.mxu0 %v48
    %60 = vmatpush.msra.mxu0 %v47
    %61 = vmatpush.msra.mxu0 %v46
    %62 = vmatpush.msra.mxu0 %v45
    %63 = vmatpush.msra.mxu0 %v44
    %64 = vmatpush.msra.mxu0 %v43
    %65 = vmatpush.msra.mxu0 %v42
    %66 = vmatpush.msra.mxu0 %v41
    %67 = vmatpush.msra.mxu0 %v40
    %68 = vmatpush.msra.mxu0 %v39
    %69 = vmatpush.msra.mxu0 %v38
    %70 = vmatmul.f32.gmra.mxu0 %v37
    %v71 = vpop.f32.mrf.mxu0
    %v72 = vadd.f32 0.0, %v71
    %73 = vdwg.mxu0
    %v74 = vadd.f32 %v36, %v72
    %75 = vst [vmem:[#allocation2] sm:$0xff] %v74
    // Predicated region
    $region22: #{_linear_forward_prepared.1} parent=1 // pred_check
      %p76 = pneg %p31
    $region23: #{_linear_forward_prepared.1} parent=1 // pred_check_branch
      %78 = sbr.rel (%p76) target = $region25
    $region24: #{_linear_forward_prepared.1} parent=1 // pred_region
      %v79 = vld [vmem:[#allocation2] sm:$0xff]
      %v80 = vld [vmem:[%s2] sm:$0x1]
      %v82 = vperm.slane %v80, 0
      %v84 = vadd.f32 %v79, %v82
      %85 = vst [vmem:[#allocation6] sm:$0xff] %v84
    $region25: #{_linear_forward_prepared.1} parent=1 // pred_fallthru
      _
    // Predicated region
    $region26: #{_linear_forward_prepared.1} parent=1 // pred_check
      _
    $region27: #{_linear_forward_prepared.1} parent=1 // pred_check_branch
      %87 = sbr.rel (0) target = $region29
    $region28: #{_linear_forward_prepared.1} parent=1 // pred_region
      %89 = vsyncadd [#allocation5], 0
      %s91 = sshll.u32 [#allocation6], 4
      %s92 = int_to_ptr.vmem [resolvable:$true] %s91
      %s93 = sshll.u32 %s3, 4
      %s94 = int_to_ptr.hbm [resolvable:$true] %s93
      %96 = dma.vmem_to_hbm [thread:$0]  %s92, 128, %s94, [#allocation5]
    $region29: #{_linear_forward_prepared.1} parent=1 // pred_fallthru
      _
    // Predicated region
    $region30: #{_linear_forward_prepared.1} parent=1 // pred_check
      _
    $region31: #{_linear_forward_prepared.1} parent=1 // pred_check_branch
      %98 = sbr.rel (0) target = $region33
    $region32: #{_linear_forward_prepared.1} parent=1 // pred_region
      %100 = dma.done [#allocation5], 128
    $region33: #{_linear_forward_prepared.1} parent=1 // pred_fallthru
      _
    %101 = vsyncpa [#allocation4], 1
    %102 = vsyncpa [#allocation5], 1

</llo_original>
